<compile_context>
chip_gen: v7x
topology: tpu7x:2x2x1
jax: 0.10.0
libtpu: 0.0.40
codegen_flags: <defaults>
</compile_context>

<pallas_src>
import math

import jax
import jax.numpy as jnp
from jax import lax
from jax.experimental import pallas as pl
from jax.experimental.pallas import tpu as pltpu


_N_TRASH_ROWS = 8  # scatter destinations for empty expert slots (sliced off afterwards)


def _vmem_capacity_bytes():
    try:
        return int(pltpu.get_tpu_info().vmem_capacity_bytes)
    except Exception:
        return 64 * 1024 * 1024  # conservative (v7x-sized) fallback


def _pick_tile(dim, prefs, full_threshold):
    """Largest preferred tile dividing `dim`; the whole dim if small / indivisible."""
    if dim <= full_threshold:
        return dim
    for t in prefs:
        if dim % t == 0:
            return t
    return dim


# -----------------------------------------------------------------------------------
# Fused kernel: dispatch gather + per-expert MLP + gated combine scatter
# -----------------------------------------------------------------------------------
def fused_moe_expert_kernel(token_src, dst_row, x, gate_ec, w1, b1, w2, b2,
                            capacity, out_rows):
    """token_src/dst_row: [E*C] int32; x: [S, M] f32 (HBM, row-gathered);
    gate_ec: [E, C, 1] f32; w1: [E,M,F]; b1: [E,1,F]; w2: [E,F,M]; b2: [E,1,M].
    Returns out [out_rows, M] f32.  Rows that no valid slot writes (dropped tokens,
    trash rows) contain garbage and must be masked/sliced by the caller."""
    E, M, F = w1.shape
    C = int(capacity)

    # ---- generation-aware tile selection (review: smaller tiles on 64 MiB VMEM) ----
    cap = _vmem_capacity_bytes()
    small_vmem = cap <= 64 * 1024 * 1024                     # v7x-class
    tF = _pick_tile(F, (256, 128) if small_vmem else (512, 256, 128),
                    512 if small_vmem else 1024)
    tC = _pick_tile(C, (256, 128, 64, 32, 16, 8) if small_vmem
                    else (512, 256, 128, 64, 32, 16, 8),
                    256 if small_vmem else 512)
    assert F % tF == 0 and C % tC == 0
    nf = F // tF
    nc = C // tC

    w1 = w1.astype(jnp.bfloat16)
    w2 = w2.astype(jnp.bfloat16)
    b1 = b1.astype(jnp.float32)
    b2 = b2.astype(jnp.float32)
    gate_ec = gate_ec.astype(jnp.float32)
    # TODO(synk): gather x in bf16 (viewed as packed u32 rows) to halve gather bytes on
    # v5e; kept f32 here to avoid packed single-row DMA hazards.
    x = x.astype(jnp.float32)

    def kernel(tok_ref, dst_ref,                               # scalar prefetch (SMEM)
               x_hbm, gate_ref, w1_ref, b1_ref, w2_ref, b2_ref,
               out_hbm,                                        # raw HBM output
               xbuf, xbf16, acc_ref, gsem, ssem):              # scratch
        e = pl.program_id(0)
        c = pl.program_id(1)
        f = pl.program_id(2)
        nc_ = pl.num_programs(1)
        nf_ = pl.num_programs(2)

        def start_gather(ct):
            # Row-gather the tC tokens of capacity tile `ct` of expert `e` from HBM.
            base = e * C + ct * tC

            def body(i, carry):
                pltpu.make_async_copy(
                    x_hbm.at[pl.ds(tok_ref[base + i], 1), :],
                    xbuf.at[pl.ds(i, 1), :],
                    gsem.at[0]).start()
                return carry
            lax.fori_loop(0, tC, body, 0)

        def wait_gather():
            def body(i, carry):
                pltpu.make_async_copy(
                    x_hbm.at[pl.ds(0, 1), :],
                    xbuf.at[pl.ds(0, 1), :],
                    gsem.at[0]).wait()
                return carry
            lax.fori_loop(0, tC, body, 0)

        @pl.when(f == 0)
        def _load():
            # Prime the gather for the first c-tile of this expert.  Later c-tiles were
            # prefetched at f==0 of the previous tile.  We never prefetch across experts,
            # so a megacore split of the (parallel) E axis stays correct.
            @pl.when(c == 0)
            def _prime():
                start_gather(c)
            wait_gather()
            # Hoisted bf16 cast: once per c-tile (not per F-tile); frees xbuf.
            xbf16[...] = xbuf[...].astype(jnp.bfloat16)
            acc_ref[...] = jnp.broadcast_to(b2_ref[0], acc_ref.shape)
            # xbuf is no longer needed -> prefetch the next c-tile's rows so the gather
            # overlaps the entire F reduction of the current tile.
            @pl.when(c + 1 < nc_)
            def _prefetch():
                start_gather(c + 1)

        # Expert FFN: bf16 MXU operands, f32 accumulation; bias + GELU in f32.
        h = jnp.dot(xbf16[...], w1_ref[0], preferred_element_type=jnp.float32)
        h = h + b1_ref[0]
        # TODO(synk): torch.nn.GELU defaults to exact erf; tanh approximation kept here.
        h = jax.nn.gelu(h, approximate=True)
        acc_ref[...] += jnp.dot(h.astype(jnp.bfloat16), w2_ref[0],
                                preferred_element_type=jnp.float32)

        @pl.when(f == nf_ - 1)
        def _combine_scatter():
            # Combine fused into the writeback: scale each slot row by its gate prob and
            # row-scatter straight to the output (empty slots hit trash rows >= S).
            acc_ref[...] = acc_ref[...] * gate_ref[0]
            base = e * C + c * tC

            def start_body(i, carry):
                pltpu.make_async_copy(
                    acc_ref.at[pl.ds(i, 1), :],
                    out_hbm.at[pl.ds(dst_ref[base + i], 1), :],
                    ssem.at[0]).start()
                return carry
            lax.fori_loop(0, tC, start_body, 0)

            def wait_body(i, carry):
                pltpu.make_async_copy(
                    acc_ref.at[pl.ds(0, 1), :],
                    out_hbm.at[pl.ds(0, 1), :],
                    ssem.at[0]).wait()
                return carry
            lax.fori_loop(0, tC, wait_body, 0)

    # ---- explicit VMEM budget derived from the chosen tiles (review item) -----------
    dbuf = 2  # default double-buffering of blocked inputs
    need = (dbuf * (M * tF * 2 + tF * M * 2)        # w1 / w2 bf16 tiles
            + dbuf * (tF * 4 + M * 4 + tC * 4)      # b1 / b2 / gate tiles
            + tC * M * (4 + 2 + 4))                 # xbuf f32 + xbf16 + acc f32
    vmem_limit = int(min(cap * 0.96, max(need * 2 + (8 << 20), 32 << 20)))

    flops = 4 * E * C * M * F
    bytes_accessed = int((w1.size + w2.size) * 2
                         + (b1.size + b2.size + gate_ec.size) * 4
                         + E * C * M * 4            # gathered activations
                         + E * C * M * 4)           # scattered outputs

    grid_spec = pltpu.PrefetchScalarGridSpec(
        num_scalar_prefetch=2,
        grid=(E, nc, nf),
        in_specs=[
            pl.BlockSpec(memory_space=pl.ANY),                                 # x (HBM)
            pl.BlockSpec((1, tC, 1), lambda e, c, f, tok, dst: (e, c, 0)),     # gate
            pl.BlockSpec((1, M, tF), lambda e, c, f, tok, dst: (e, 0, f)),     # w1
            pl.BlockSpec((1, 1, tF), lambda e, c, f, tok, dst: (e, 0, f)),     # b1
            pl.BlockSpec((1, tF, M), lambda e, c, f, tok, dst: (e, f, 0)),     # w2
            pl.BlockSpec((1, 1, M),  lambda e, c, f, tok, dst: (e, 0, 0)),     # b2
        ],
        out_specs=pl.BlockSpec(memory_space=pl.ANY),                           # out (HBM)
        scratch_shapes=[
            pltpu.VMEM((tC, M), jnp.float32),      # gathered token rows (DMA landing)
            pltpu.VMEM((tC, M), jnp.bfloat16),     # hoisted bf16 cast of the rows
            pltpu.VMEM((tC, M), jnp.float32),      # f32 output accumulator
            pltpu.SemaphoreType.DMA((1,)),         # gather semaphore (shared, looped)
            pltpu.SemaphoreType.DMA((1,)),         # scatter semaphore
        ],
    )
    return pl.pallas_call(
        kernel,
        out_shape=jax.ShapeDtypeStruct((out_rows, M), jnp.float32),
        grid_spec=grid_spec,
        compiler_params=pltpu.CompilerParams(
            # E parallel (megacore); c-tiles kept "arbitrary" so the within-expert
            # gather prefetch stays on the core that consumes it.
            dimension_semantics=("parallel", "arbitrary", "arbitrary"),
            vmem_limit_bytes=vmem_limit),
        cost_estimate=pl.CostEstimate(flops=flops,
                                      transcendentals=E * C * F,
                                      bytes_accessed=bytes_accessed),
    )(token_src, dst_row, x, gate_ec, w1, b1, w2, b2)


# -----------------------------------------------------------------------------------
# Top-1 gating (DeepSpeed top1gating semantics, drop_tokens=True) — cheap JAX glue.
# Produces routing/scale tables for the fused kernel instead of dense masks.
# -----------------------------------------------------------------------------------
def top1_gate_routing(logits, capacity_factor, min_capacity, used_token=None):
    S, E = logits.shape
    gates = jax.nn.softmax(logits, axis=1)                               # [S, E]
    capacity = max(int(math.ceil((S / E) * capacity_factor)), int(min_capacity))

    indices1_s = jnp.argmax(gates, axis=1)                               # [S]
    mask1 = jax.nn.one_hot(indices1_s, E, dtype=jnp.int32)               # [S, E]
    if used_token is not None:
        mask1 = (used_token[:, None] * mask1).astype(jnp.int32)

    # expert counts + aux loss: before the capacity drop, as in DeepSpeed
    exp_counts = jnp.sum(mask1, axis=0).astype(jnp.int32)
    me = jnp.mean(gates, axis=0)
    ce = jnp.mean(mask1.astype(jnp.float32), axis=0)
    l_aux = jnp.sum(me * ce) * E

    # drop_tokens=True: keep the first `capacity` tokens routed to each expert.
    # TODO(synk): DeepSpeed's Random Token Selection (use_rts=True) and noisy_gate_policy
    # randomize this selection; omitted for determinism.
    positions = jnp.cumsum(mask1, axis=0) - 1
    mask1 = mask1 * (positions < capacity).astype(jnp.int32)

    locations1 = jnp.cumsum(mask1, axis=0) - 1
    slot_s = jnp.sum(locations1 * mask1, axis=1)                         # slot in expert
    kept = jnp.sum(mask1, axis=1) > 0                                    # [S]
    gate_s = jnp.sum(gates * mask1.astype(gates.dtype), axis=1)          # selected prob

    EC = E * capacity
    flat_slot = indices1_s * capacity + slot_s
    scatter_idx = jnp.where(kept, flat_slot, EC)                         # OOB -> dropped
    tok_arange = jnp.arange(S, dtype=jnp.int32)

    # slot (e,c) -> source row of x (empty slots read row 0, harmlessly)
    token_src = jnp.zeros((EC,), jnp.int32).at[scatter_idx].set(tok_arange, mode="drop")
    # slot (e,c) -> destination row in out (empty slots write to trash rows >= S)
    trash = (S + (jnp.arange(EC, dtype=jnp.int32) % _N_TRASH_ROWS)).astype(jnp.int32)
    dst_row = trash.at[scatter_idx].set(tok_arange, mode="drop")
    # slot (e,c) -> gate probability (0 for empty slots)
    gate_flat = jnp.zeros((EC,), jnp.float32).at[scatter_idx].set(
        gate_s.astype(jnp.float32), mode="drop")
    gate_ec = gate_flat.reshape(E, capacity, 1)

    return l_aux, exp_counts, capacity, token_src, dst_row, gate_ec, kept


# -----------------------------------------------------------------------------------
# MoE forward (MoE.forward with use_residual=False, ep_size=1, k=1)
# -----------------------------------------------------------------------------------
def moe_forward(params, hidden_states, used_token=None,
                capacity_factor=1.0, min_capacity=4):
    B, T, M = hidden_states.shape
    S = B * T
    x = hidden_states.reshape(S, M).astype(jnp.float32)

    # gate logits (nn.Linear(model_dim, num_experts, bias=False)): tiny, leave to XLA
    logits = jnp.dot(x, params["wg"].astype(jnp.float32))                # [S, E]

    (l_aux, exp_counts, C, token_src, dst_row, gate_ec, kept) = top1_gate_routing(
        logits, capacity_factor, min_capacity, used_token)

    out_rows = S + _N_TRASH_ROWS
    out_raw = fused_moe_expert_kernel(token_src, dst_row, x, gate_ec,
                                      params["w1"], params["b1"],
                                      params["w2"], params["b2"],
                                      C, out_rows)                       # [S+trash, M]

    # Rows of dropped tokens are never written by the kernel -> zero them here.
    # TODO(synk): removable by aliasing a pre-zeroed buffer via input_output_aliases.
    combined = jnp.where(kept[:, None], out_raw[:S], 0.0)
    output = combined.reshape(B, T, M).astype(hidden_states.dtype)
    return output, l_aux, exp_counts


# -----------------------------------------------------------------------------------
# Pure-JAX dense reference (DeepSpeed einsum formulation) for validation
# -----------------------------------------------------------------------------------
def moe_forward_reference(params, hidden_states, capacity_factor=1.0, min_capacity=4):
    B, T, M = hidden_states.shape
    S = B * T
    x = hidden_states.reshape(S, M).astype(jnp.float32)
    logits = jnp.dot(x, params["wg"].astype(jnp.float32))
    gates = jax.nn.softmax(logits, axis=1)
    E = gates.shape[1]
    C = max(int(math.ceil((S / E) * capacity_factor)), int(min_capacity))
    idx = jnp.argmax(gates, axis=1)
    mask1 = jax.nn.one_hot(idx, E, dtype=jnp.int32)
    positions = jnp.cumsum(mask1, axis=0) - 1
    mask1 = mask1 * (positions < C).astype(jnp.int32)
    locations1 = jnp.cumsum(mask1, axis=0) - 1
    loc_s = jnp.sum(locations1 * mask1, axis=1)
    gates_masked = gates * mask1.astype(gates.dtype)
    loc_sc = jax.nn.one_hot(loc_s, C, dtype=jnp.float32)
    combine_w = gates_masked[:, :, None] * loc_sc[:, None, :]            # [S, E, C]
    dispatch_m = (combine_w > 0).astype(jnp.float32)
    dispatched = jnp.einsum("sec,sm->ecm", dispatch_m, x)
    w1 = params["w1"].astype(jnp.bfloat16)
    w2 = params["w2"].astype(jnp.bfloat16)
    h = jnp.einsum("ecm,emf->ecf", dispatched.astype(jnp.bfloat16), w1,
                   preferred_element_type=jnp.float32) + params["b1"]
    h = jax.nn.gelu(h, approximate=True)
    y = jnp.einsum("ecf,efm->ecm", h.astype(jnp.bfloat16), w2,
                   preferred_element_type=jnp.float32) + params["b2"]
    out = jnp.einsum("sec,ecm->sm", combine_w, y)
    return out.reshape(B, T, M).astype(hidden_states.dtype)


if __name__ == "__main__":
    B, T, M = 2, 8, 32          # batch, seq, hidden_size
    E = 4                       # num_experts (k=1, ep_size=1)
    F = 64                      # expert FFN hidden dim

    key = jax.random.PRNGKey(0)
    k_x, k_wg, k_w1, k_b1, k_w2, k_b2 = jax.random.split(key, 6)

    hidden_states = jax.random.normal(k_x, (B, T, M), dtype=jnp.float32)
    params = {
        # gate weight, stored as [M, E] so logits = x @ wg
        "wg": jax.random.normal(k_wg, (M, E), dtype=jnp.float32) / math.sqrt(M),
        # per-expert MLP weights (Experts: one MLP per local expert)
        "w1": jax.random.normal(k_w1, (E, M, F), dtype=jnp.float32) / math.sqrt(M),
        "b1": jax.random.normal(k_b1, (E, 1, F), dtype=jnp.float32) * 0.01,
        "w2": jax.random.normal(k_w2, (E, F, M), dtype=jnp.float32) / math.sqrt(F),
        "b2": jax.random.normal(k_b2, (E, 1, M), dtype=jnp.float32) * 0.01,
    }

    output, l_aux, exp_counts = jax.jit(moe_forward)(params, hidden_states)
    jax.block_until_ready((output, l_aux, exp_counts))

    assert output.shape == hidden_states.shape
    assert exp_counts.shape == (E,)
    assert bool(jnp.isfinite(l_aux))

    # validate against the dense einsum reference (same bf16 matmul precision)
    ref = jax.jit(moe_forward_reference)(params, hidden_states)
    jax.block_until_ready(ref)
    assert bool(jnp.allclose(output, ref, rtol=2e-2, atol=2e-2)), "mismatch vs reference"

    print("KERNEL_OK")
</pallas_src>

<mosaic_0001>
module attributes {stable_mosaic.version = 11 : i64} {
  func.func @kernel(%arg0: i32, %arg1: i32, %arg2: i32, %arg3: memref<16xi32, #tpu.memory_space<smem>>, %arg4: memref<16xi32, #tpu.memory_space<smem>>, %arg5: memref<16x32xf32, #tpu.memory_space<any>>, %arg6: memref<1x4x1xf32, #tpu.memory_space<vmem>>, %arg7: memref<1x32x64xbf16, #tpu.memory_space<vmem>>, %arg8: memref<1x1x64xf32, #tpu.memory_space<vmem>>, %arg9: memref<1x64x32xbf16, #tpu.memory_space<vmem>>, %arg10: memref<1x1x32xf32, #tpu.memory_space<vmem>>, %arg11: memref<24x32xf32, #tpu.memory_space<any>>, %arg12: memref<4x32xf32, #tpu.memory_space<vmem>>, %arg13: memref<4x32xbf16, #tpu.memory_space<vmem>>, %arg14: memref<4x32xf32, #tpu.memory_space<vmem>>, %arg15: memref<1x!tpu.dma_semaphore, #tpu.memory_space<semaphore_mem>>, %arg16: memref<1x!tpu.dma_semaphore, #tpu.memory_space<semaphore_mem>>) attributes {dimension_semantics = [#tpu.dimension_semantics<parallel>, #tpu.dimension_semantics<arbitrary>, #tpu.dimension_semantics<arbitrary>], iteration_bounds = array<i64: 4, 1, 1>, scalar_prefetch = 2 : i64, scratch_operands = 5 : i64, tpu.core_type = #tpu.core_type<tc>, window_params = [{}, {transform_indices = @transform_1, window_bounds = array<i64: 1, 4, 1>}, {transform_indices = @transform_2, window_bounds = array<i64: 1, 32, 64>}, {transform_indices = @transform_3, window_bounds = array<i64: 1, 1, 64>}, {transform_indices = @transform_4, window_bounds = array<i64: 1, 64, 32>}, {transform_indices = @transform_5, window_bounds = array<i64: 1, 1, 32>}, {}]} {
    %c0_i32 = arith.constant 0 : i32
    %0 = arith.cmpi eq, %arg2, %c0_i32 : i32
    %1 = arith.extui %0 : i1 to i32
    %c0_i32_0 = arith.constant 0 : i32
    %2 = arith.cmpi ne, %1, %c0_i32_0 : i32
    scf.if %2 {
      %c0_i32_22 = arith.constant 0 : i32
      %34 = arith.cmpi eq, %arg1, %c0_i32_22 : i32
      %35 = arith.extui %34 : i1 to i32
      %c0_i32_23 = arith.constant 0 : i32
      %36 = arith.cmpi ne, %35, %c0_i32_23 : i32
      scf.if %36 {
        %c4_i32_37 = arith.constant 4 : i32
        %50 = arith.muli %arg0, %c4_i32_37 : i32
        %c4_i32_38 = arith.constant 4 : i32
        %51 = arith.muli %arg1, %c4_i32_38 : i32
        %52 = arith.addi %50, %51 : i32
        %c0_i32_39 = arith.constant 0 : i32
        %c4_i32_40 = arith.constant 4 : i32
        %53 = arith.addi %c0_i32_39, %c4_i32_40 : i32
        %c1_i32_41 = arith.constant 1 : i32
        scf.for %arg17 = %c0_i32_39 to %53 step %c1_i32_41  : i32 {
          %54 = arith.addi %52, %arg17 : i32
          %55 = arith.index_cast %54 : i32 to index
          %56 = memref.load %arg3[%55] : memref<16xi32, #tpu.memory_space<smem>>
          %c0_i32_43 = arith.constant 0 : i32
          %c0_i32_44 = arith.constant 0 : i32
          %57 = tpu.memref_slice %arg5[%56, %c0_i32_44] : memref<16x32xf32, #tpu.memory_space<any>> -> memref<1x32xf32, #tpu.memory_space<any>>
          %c0_i32_45 = arith.constant 0 : i32
          %58 = tpu.memref_slice %arg12[%arg17, %c0_i32_45] : memref<4x32xf32, #tpu.memory_space<vmem>> -> memref<1x32xf32, #tpu.memory_space<vmem>>
          %59 = tpu.memref_slice %arg15[%c0_i32_43] : memref<1x!tpu.dma_semaphore, #tpu.memory_space<semaphore_mem>> -> memref<1x!tpu.dma_semaphore, #tpu.memory_space<semaphore_mem>>
          %60 = tpu.memref_squeeze %59 : memref<1x!tpu.dma_semaphore, #tpu.memory_space<semaphore_mem>> -> memref<!tpu.dma_semaphore, #tpu.memory_space<semaphore_mem>>
          tpu.enqueue_dma source(%57 : memref<1x32xf32, #tpu.memory_space<any>>) target(%58 : memref<1x32xf32, #tpu.memory_space<vmem>>) target_semaphore(%60 : memref<!tpu.dma_semaphore, #tpu.memory_space<semaphore_mem>>)
        }
        %c4_i32_42 = arith.constant 4 : i32
      } else {
      }
      %c0_i32_24 = arith.constant 0 : i32
      %c4_i32 = arith.constant 4 : i32
      %37 = arith.addi %c0_i32_24, %c4_i32 : i32
      %c1_i32 = arith.constant 1 : i32
      scf.for %arg17 = %c0_i32_24 to %37 step %c1_i32  : i32 {
        %c0_i32_37 = arith.constant 0 : i32
        %c0_i32_38 = arith.constant 0 : i32
        %c0_i32_39 = arith.constant 0 : i32
        %50 = tpu.memref_slice %arg5[%c0_i32_38, %c0_i32_39] : memref<16x32xf32, #tpu.memory_space<any>> -> memref<1x32xf32, #tpu.memory_space<any>>
        %c0_i32_40 = arith.constant 0 : i32
        %c0_i32_41 = arith.constant 0 : i32
        %51 = tpu.memref_slice %arg12[%c0_i32_40, %c0_i32_41] : memref<4x32xf32, #tpu.memory_space<vmem>> -> memref<1x32xf32, #tpu.memory_space<vmem>>
        %52 = tpu.memref_slice %arg15[%c0_i32_37] : memref<1x!tpu.dma_semaphore, #tpu.memory_space<semaphore_mem>> -> memref<1x!tpu.dma_semaphore, #tpu.memory_space<semaphore_mem>>
        %53 = tpu.memref_squeeze %52 : memref<1x!tpu.dma_semaphore, #tpu.memory_space<semaphore_mem>> -> memref<!tpu.dma_semaphore, #tpu.memory_space<semaphore_mem>>
        tpu.wait_dma2 semaphore(%53 : memref<!tpu.dma_semaphore, #tpu.memory_space<semaphore_mem>>) src(%50 : memref<1x32xf32, #tpu.memory_space<any>>) dst(%51 : memref<1x32xf32, #tpu.memory_space<vmem>>)
      }
      %c0_25 = arith.constant 0 : index
      %c0_26 = arith.constant 0 : index
      %38 = vector.load %arg12[%c0_25, %c0_26] : memref<4x32xf32, #tpu.memory_space<vmem>>, vector<4x32xf32>
      %39 = arith.truncf %38 : vector<4x32xf32> to vector<4x32xbf16>
      %c0_27 = arith.constant 0 : index
      %c0_28 = arith.constant 0 : index
      %40 = vector.load %arg13[%c0_27, %c0_28] : memref<4x32xbf16, #tpu.memory_space<vmem>>, vector<4x32xbf16>
      tpu.vector_store %arg13[%c0_27, %c0_28], %39 {strides = array<i32>} : memref<4x32xbf16, #tpu.memory_space<vmem>>, vector<4x32xbf16>,
      %c0_29 = arith.constant 0 : index
      %c0_30 = arith.constant 0 : index
      %c0_31 = arith.constant 0 : index
      %41 = vector.load %arg10[%c0_29, %c0_30, %c0_31] : memref<1x1x32xf32, #tpu.memory_space<vmem>>, vector<1x1x32xf32>
      %42 = vector.shape_cast %41 : vector<1x1x32xf32> to vector<1x32xf32>
      %43 = vector.shape_cast %42 : vector<1x32xf32> to vector<1x32xf32>
      %44 = vector.broadcast %43 : vector<1x32xf32> to vector<4x32xf32>
      %c0_32 = arith.constant 0 : index
      %c0_33 = arith.constant 0 : index
      %45 = vector.load %arg14[%c0_32, %c0_33] : memref<4x32xf32, #tpu.memory_space<vmem>>, vector<4x32xf32>
      tpu.vector_store %arg14[%c0_32, %c0_33], %44 {strides = array<i32>} : memref<4x32xf32, #tpu.memory_space<vmem>>, vector<4x32xf32>,
      %c1_i32_34 = arith.constant 1 : i32
      %46 = arith.addi %arg1, %c1_i32_34 : i32
      %c1_i32_35 = arith.constant 1 : i32
      %47 = arith.cmpi slt, %46, %c1_i32_35 : i32
      %48 = arith.extui %47 : i1 to i32
      %c0_i32_36 = arith.constant 0 : i32
      %49 = arith.cmpi ne, %48, %c0_i32_36 : i32
      scf.if %49 {
        %c1_i32_37 = arith.constant 1 : i32
        %50 = arith.addi %arg1, %c1_i32_37 : i32
        %c4_i32_38 = arith.constant 4 : i32
        %51 = arith.muli %arg0, %c4_i32_38 : i32
        %c4_i32_39 = arith.constant 4 : i32
        %52 = arith.muli %50, %c4_i32_39 : i32
        %53 = arith.addi %51, %52 : i32
        %c0_i32_40 = arith.constant 0 : i32
        %c4_i32_41 = arith.constant 4 : i32
        %54 = arith.addi %c0_i32_40, %c4_i32_41 : i32
        %c1_i32_42 = arith.constant 1 : i32
        scf.for %arg17 = %c0_i32_40 to %54 step %c1_i32_42  : i32 {
          %55 = arith.addi %53, %arg17 : i32
          %56 = arith.index_cast %55 : i32 to index
          %57 = memref.load %arg3[%56] : memref<16xi32, #tpu.memory_space<smem>>
          %c0_i32_44 = arith.constant 0 : i32
          %c0_i32_45 = arith.constant 0 : i32
          %58 = tpu.memref_slice %arg5[%57, %c0_i32_45] : memref<16x32xf32, #tpu.memory_space<any>> -> memref<1x32xf32, #tpu.memory_space<any>>
          %c0_i32_46 = arith.constant 0 : i32
          %59 = tpu.memref_slice %arg12[%arg17, %c0_i32_46] : memref<4x32xf32, #tpu.memory_space<vmem>> -> memref<1x32xf32, #tpu.memory_space<vmem>>
          %60 = tpu.memref_slice %arg15[%c0_i32_44] : memref<1x!tpu.dma_semaphore, #tpu.memory_space<semaphore_mem>> -> memref<1x!tpu.dma_semaphore, #tpu.memory_space<semaphore_mem>>
          %61 = tpu.memref_squeeze %60 : memref<1x!tpu.dma_semaphore, #tpu.memory_space<semaphore_mem>> -> memref<!tpu.dma_semaphore, #tpu.memory_space<semaphore_mem>>
          tpu.enqueue_dma source(%58 : memref<1x32xf32, #tpu.memory_space<any>>) target(%59 : memref<1x32xf32, #tpu.memory_space<vmem>>) target_semaphore(%61 : memref<!tpu.dma_semaphore, #tpu.memory_space<semaphore_mem>>)
        }
        %c4_i32_43 = arith.constant 4 : i32
      } else {
      }
    } else {
    }
    %c0 = arith.constant 0 : index
    %c0_1 = arith.constant 0 : index
    %3 = vector.load %arg13[%c0, %c0_1] : memref<4x32xbf16, #tpu.memory_space<vmem>>, vector<4x32xbf16>
    %c0_2 = arith.constant 0 : index
    %c0_3 = arith.constant 0 : index
    %c0_4 = arith.constant 0 : index
    %4 = vector.load %arg7[%c0_2, %c0_3, %c0_4] : memref<1x32x64xbf16, #tpu.memory_space<vmem>>, vector<1x32x64xbf16>
    %5 = vector.shape_cast %4 : vector<1x32x64xbf16> to vector<32x64xbf16>
    %cst = arith.constant dense<0.000000e+00> : vector<4x64xf32>
    %6 = tpu.matmul %3, %5, %cst {dimension_numbers = #tpu.dot_dimension_numbers<[1], [0], [0], [1], [0, 0, 1, 1], [], []>} : vector<4x32xbf16>, vector<32x64xbf16>, vector<4x64xf32> -> vector<4x64xf32>
    %c0_5 = arith.constant 0 : index
    %c0_6 = arith.constant 0 : index
    %c0_7 = arith.constant 0 : index
    %7 = vector.load %arg8[%c0_5, %c0_6, %c0_7] : memref<1x1x64xf32, #tpu.memory_space<vmem>>, vector<1x1x64xf32>
    %8 = vector.shape_cast %7 : vector<1x1x64xf32> to vector<1x64xf32>
    %9 = vector.broadcast %8 : vector<1x64xf32> to vector<4x64xf32>
    %10 = arith.addf %6, %9 : vector<4x64xf32>
    %11 = arith.mulf %10, %10 : vector<4x64xf32>
    %12 = arith.mulf %10, %11 : vector<4x64xf32>
    %cst_8 = arith.constant 4.471500e-02 : f32
    %13 = vector.broadcast %cst_8 : f32 to vector<4x64xf32>
    %14 = arith.mulf %13, %12 : vector<4x64xf32>
    %15 = arith.addf %10, %14 : vector<4x64xf32>
    %cst_9 = arith.constant 0.797884583 : f32
    %16 = vector.broadcast %cst_9 : f32 to vector<4x64xf32>
    %17 = arith.mulf %16, %15 : vector<4x64xf32>
    %18 = math.tanh %17 : vector<4x64xf32>
    %cst_10 = arith.constant 1.000000e+00 : f32
    %19 = vector.broadcast %cst_10 : f32 to vector<4x64xf32>
    %20 = arith.addf %19, %18 : vector<4x64xf32>
    %cst_11 = arith.constant 5.000000e-01 : f32
    %21 = vector.broadcast %cst_11 : f32 to vector<4x64xf32>
    %22 = arith.mulf %21, %20 : vector<4x64xf32>
    %23 = arith.mulf %10, %22 : vector<4x64xf32>
    %c0_12 = arith.constant 0 : index
    %c0_13 = arith.constant 0 : index
    %24 = vector.load %arg14[%c0_12, %c0_13] : memref<4x32xf32, #tpu.memory_space<vmem>>, vector<4x32xf32>
    %25 = arith.truncf %23 : vector<4x64xf32> to vector<4x64xbf16>
    %c0_14 = arith.constant 0 : index
    %c0_15 = arith.constant 0 : index
    %c0_16 = arith.constant 0 : index
    %26 = vector.load %arg9[%c0_14, %c0_15, %c0_16] : memref<1x64x32xbf16, #tpu.memory_space<vmem>>, vector<1x64x32xbf16>
    %27 = vector.shape_cast %26 : vector<1x64x32xbf16> to vector<64x32xbf16>
    %cst_17 = arith.constant dense<0.000000e+00> : vector<4x32xf32>
    %28 = tpu.matmul %25, %27, %cst_17 {dimension_numbers = #tpu.dot_dimension_numbers<[1], [0], [0], [1], [0, 0, 1, 1], [], []>} : vector<4x64xbf16>, vector<64x32xbf16>, vector<4x32xf32> -> vector<4x32xf32>
    %29 = arith.addf %24, %28 : vector<4x32xf32>
    %c0_18 = arith.constant 0 : index
    %c0_19 = arith.constant 0 : index
    %30 = vector.load %arg14[%c0_18, %c0_19] : memref<4x32xf32, #tpu.memory_space<vmem>>, vector<4x32xf32>
    tpu.vector_store %arg14[%c0_18, %c0_19], %29 {strides = array<i32>} : memref<4x32xf32, #tpu.memory_space<vmem>>, vector<4x32xf32>,
    %c0_i32_20 = arith.constant 0 : i32
    %31 = arith.cmpi eq, %arg2, %c0_i32_20 : i32
    %32 = arith.extui %31 : i1 to i32
    %c0_i32_21 = arith.constant 0 : i32
    %33 = arith.cmpi ne, %32, %c0_i32_21 : i32
    scf.if %33 {
      %c0_22 = arith.constant 0 : index
      %c0_23 = arith.constant 0 : index
      %34 = vector.load %arg14[%c0_22, %c0_23] : memref<4x32xf32, #tpu.memory_space<vmem>>, vector<4x32xf32>
      %c0_24 = arith.constant 0 : index
      %c0_25 = arith.constant 0 : index
      %c0_26 = arith.constant 0 : index
      %35 = vector.load %arg6[%c0_24, %c0_25, %c0_26] : memref<1x4x1xf32, #tpu.memory_space<vmem>>, vector<1x4x1xf32>
      %36 = vector.shape_cast %35 : vector<1x4x1xf32> to vector<4x1xf32>
      %37 = vector.broadcast %36 : vector<4x1xf32> to vector<4x32xf32>
      %38 = arith.mulf %34, %37 : vector<4x32xf32>
      %c0_27 = arith.constant 0 : index
      %c0_28 = arith.constant 0 : index
      %39 = vector.load %arg14[%c0_27, %c0_28] : memref<4x32xf32, #tpu.memory_space<vmem>>, vector<4x32xf32>
      tpu.vector_store %arg14[%c0_27, %c0_28], %38 {strides = array<i32>} : memref<4x32xf32, #tpu.memory_space<vmem>>, vector<4x32xf32>,
      %c4_i32 = arith.constant 4 : i32
      %40 = arith.muli %arg0, %c4_i32 : i32
      %c4_i32_29 = arith.constant 4 : i32
      %41 = arith.muli %arg1, %c4_i32_29 : i32
      %42 = arith.addi %40, %41 : i32
      %c0_i32_30 = arith.constant 0 : i32
      %c4_i32_31 = arith.constant 4 : i32
      %43 = arith.addi %c0_i32_30, %c4_i32_31 : i32
      %c1_i32 = arith.constant 1 : i32
      scf.for %arg17 = %c0_i32_30 to %43 step %c1_i32  : i32 {
        %45 = arith.addi %42, %arg17 : i32
        %46 = arith.index_cast %45 : i32 to index
        %47 = memref.load %arg4[%46] : memref<16xi32, #tpu.memory_space<smem>>
        %c0_i32_36 = arith.constant 0 : i32
        %c0_i32_37 = arith.constant 0 : i32
        %48 = tpu.memref_slice %arg14[%arg17, %c0_i32_37] : memref<4x32xf32, #tpu.memory_space<vmem>> -> memref<1x32xf32, #tpu.memory_space<vmem>>
        %c0_i32_38 = arith.constant 0 : i32
        %49 = tpu.memref_slice %arg11[%47, %c0_i32_38] : memref<24x32xf32, #tpu.memory_space<any>> -> memref<1x32xf32, #tpu.memory_space<any>>
        %50 = tpu.memref_slice %arg16[%c0_i32_36] : memref<1x!tpu.dma_semaphore, #tpu.memory_space<semaphore_mem>> -> memref<1x!tpu.dma_semaphore, #tpu.memory_space<semaphore_mem>>
        %51 = tpu.memref_squeeze %50 : memref<1x!tpu.dma_semaphore, #tpu.memory_space<semaphore_mem>> -> memref<!tpu.dma_semaphore, #tpu.memory_space<semaphore_mem>>
        tpu.enqueue_dma source(%48 : memref<1x32xf32, #tpu.memory_space<vmem>>) target(%49 : memref<1x32xf32, #tpu.memory_space<any>>) target_semaphore(%51 : memref<!tpu.dma_semaphore, #tpu.memory_space<semaphore_mem>>)
      }
      %c4_i32_32 = arith.constant 4 : i32
      %c0_i32_33 = arith.constant 0 : i32
      %c4_i32_34 = arith.constant 4 : i32
      %44 = arith.addi %c0_i32_33, %c4_i32_34 : i32
      %c1_i32_35 = arith.constant 1 : i32
      scf.for %arg17 = %c0_i32_33 to %44 step %c1_i32_35  : i32 {
        %c0_i32_36 = arith.constant 0 : i32
        %c0_i32_37 = arith.constant 0 : i32
        %c0_i32_38 = arith.constant 0 : i32
        %45 = tpu.memref_slice %arg14[%c0_i32_37, %c0_i32_38] : memref<4x32xf32, #tpu.memory_space<vmem>> -> memref<1x32xf32, #tpu.memory_space<vmem>>
        %c0_i32_39 = arith.constant 0 : i32
        %c0_i32_40 = arith.constant 0 : i32
        %46 = tpu.memref_slice %arg11[%c0_i32_39, %c0_i32_40] : memref<24x32xf32, #tpu.memory_space<any>> -> memref<1x32xf32, #tpu.memory_space<any>>
        %47 = tpu.memref_slice %arg16[%c0_i32_36] : memref<1x!tpu.dma_semaphore, #tpu.memory_space<semaphore_mem>> -> memref<1x!tpu.dma_semaphore, #tpu.memory_space<semaphore_mem>>
        %48 = tpu.memref_squeeze %47 : memref<1x!tpu.dma_semaphore, #tpu.memory_space<semaphore_mem>> -> memref<!tpu.dma_semaphore, #tpu.memory_space<semaphore_mem>>
        tpu.wait_dma2 semaphore(%48 : memref<!tpu.dma_semaphore, #tpu.memory_space<semaphore_mem>>) src(%45 : memref<1x32xf32, #tpu.memory_space<vmem>>) dst(%46 : memref<1x32xf32, #tpu.memory_space<any>>)
      }
    } else {
    }
    return
  }
  func.func @transform_1(%arg0: i32, %arg1: i32, %arg2: i32, %arg3: memref<16xi32, #tpu.memory_space<smem>>, %arg4: memref<16xi32, #tpu.memory_space<smem>>) -> (i32, i32, i32) {
    %c0_i32 = arith.constant 0 : i32
    %c0_i32_0 = arith.constant 0 : i32
    return %arg0, %arg1, %c0_i32 : i32, i32, i32
  }
  func.func @transform_2(%arg0: i32, %arg1: i32, %arg2: i32, %arg3: memref<16xi32, #tpu.memory_space<smem>>, %arg4: memref<16xi32, #tpu.memory_space<smem>>) -> (i32, i32, i32) {
    %c0_i32 = arith.constant 0 : i32
    %c0_i32_0 = arith.constant 0 : i32
    return %arg0, %c0_i32, %arg2 : i32, i32, i32
  }
  func.func @transform_3(%arg0: i32, %arg1: i32, %arg2: i32, %arg3: memref<16xi32, #tpu.memory_space<smem>>, %arg4: memref<16xi32, #tpu.memory_space<smem>>) -> (i32, i32, i32) {
    %c0_i32 = arith.constant 0 : i32
    %c0_i32_0 = arith.constant 0 : i32
    return %arg0, %c0_i32, %arg2 : i32, i32, i32
  }
  func.func @transform_4(%arg0: i32, %arg1: i32, %arg2: i32, %arg3: memref<16xi32, #tpu.memory_space<smem>>, %arg4: memref<16xi32, #tpu.memory_space<smem>>) -> (i32, i32, i32) {
    %c0_i32 = arith.constant 0 : i32
    %c0_i32_0 = arith.constant 0 : i32
    return %arg0, %arg2, %c0_i32 : i32, i32, i32
  }
  func.func @transform_5(%arg0: i32, %arg1: i32, %arg2: i32, %arg3: memref<16xi32, #tpu.memory_space<smem>>, %arg4: memref<16xi32, #tpu.memory_space<smem>>) -> (i32, i32, i32) {
    %c0_i32 = arith.constant 0 : i32
    %c0_i32_0 = arith.constant 0 : i32
    %c0_i32_1 = arith.constant 0 : i32
    return %arg0, %c0_i32, %c0_i32_0 : i32, i32, i32
  }
}

</mosaic_0001>

<llo_original>
// kernel: moe_forward.1
$region0: #{moe_forward.1}
  #allocation0 [shape = 'u32[]', space=smem, size = 0x4, offset = 0x4, fixed_abs, tag = 'smem constant byte address 0x4 - core index']
  #allocation1 [shape = 'u32[144,128]{1,0:T(1,128)}', space=vmem, size = 0x12000, scoped, tag = 'internal scratch']
  #allocation2 [shape = 'f32[4,32]{1,0:T(4,128)}', space=vmem, size = 0x800, scoped, tag = 'scratch operand']
  #allocation3 [shape = 'bf16[4,32]{1,0:T(4,128)(2,1)}', space=vmem, size = 0x400, scoped, tag = 'scratch operand']
  #allocation4 [shape = 'f32[4,32]{1,0:T(4,128)}', space=vmem, size = 0x800, scoped, tag = 'scratch operand']
  #allocation5 [shape = 's32[1]{0}', space=sflag, size = 0x4, scoped, tag = 'scratch operand']
  #allocation6 [shape = 's32[1]{0}', space=sflag, size = 0x4, scoped, tag = 'scratch operand']
  #allocation7 [shape = 's32[1]{0}', space=sflag, size = 0x4, scoped, tag = 'scoped memory for moe_forward.1']
  #allocation8 [shape = 'u8[512]{0}', space=smem, size = 0x200, scoped, tag = 'prefetched SMEM operand 0']
  #allocation9 [shape = 'u8[512]{0}', space=smem, size = 0x200, scoped, tag = 'prefetched SMEM operand 1']
  #allocation10 [shape = 's32[]', space=sflag, size = 0x4, offset = 0, fixed_abs, tag = 'sflag constant byte address 0x0 - dummy sync flag']
  #allocation11 [shape = 's32[]', space=sflag, size = 0x4, offset = 0, fixed_abs, tag = 'sflag constant byte address 0x0 - dummy sync flag']
  #allocation12 [shape = 's32[]', space=sflag, size = 0x4, offset = 0, fixed_abs, tag = 'sflag constant byte address 0x0 - dummy sync flag']
  %s0 = inlined_call_operand.vmem [shape: s32[16], index: 0, kind: input, shape index: {}]
  %s1 = inlined_call_operand.vmem [shape: s32[16], index: 1, kind: input, shape index: {}]
  %s2 = inlined_call_operand.vmem [shape: f32[16,32], index: 2, kind: input, shape index: {}]
  %s3 = inlined_call_operand.vmem [shape: f32[4,4,1], index: 3, kind: input, shape index: {}]
  %s4 = inlined_call_operand.vmem [shape: bf16[4,32,64], index: 4, kind: input, shape index: {}]
  %s5 = inlined_call_operand.vmem [shape: f32[4,1,64], index: 5, kind: input, shape index: {}]
  %s6 = inlined_call_operand.vmem [shape: bf16[4,64,32], index: 6, kind: input, shape index: {}]
  %s7 = inlined_call_operand.vmem [shape: f32[4,1,32], index: 7, kind: input, shape index: {}]
  %s8 = inlined_call_operand.vmem [shape: f32[24,32], index: 8, kind: output, shape index: {}]
  %s9 = sld [smem:[#allocation0]]
  $region182: #{moe_forward.1} parent=0
    _
  %s11 = ssub.s32 1, %s9
  %s12 = scalar_select 0, %s11, %s9
  %s13 = sshll.u32 %s0, 4
  %s14 = int_to_ptr.vmem [resolvable:$true] %s13
  %16 = dma.vmem_to_smem %s14, 16, [#allocation8], [#allocation7]
  %s17 = sshll.u32 %s1, 4
  %s18 = int_to_ptr.vmem [resolvable:$true] %s17
  %20 = dma.vmem_to_smem %s18, 16, [#allocation9], [#allocation7]
  %21 = dma.done [#allocation7], 32
  %22 = sfence
  loop: start=0, step=1, limit=5
  $region2: #{moe_forward.1} parent=0 // loop_pre_header
    _
  $region3: #{moe_forward.1} parent=0 // loop_header
    %s24 = sphi 0, %s28
    %p25 = scmp.ge.s32.totalorder %s24, 5
    %s30 = sphi 0, %s46
    %s31 = sphi 0, %s42
    %s32 = sphi 0, %s38
    %s33 = sphi 0, %s30
    %s34 = sphi 0, %s31
    %s35 = sphi 0, %s32
    %s51 = sphi 0, %s53
    %s54 = sphi 0, %s51
    %s64 = sphi 0, %s54
    %s72 = sphi 0, %s74
    %s75 = sphi 0, %s72
    %s85 = sphi 0, %s75
    %s93 = sphi 0, %s95
    %s96 = sphi 0, %s93
    %s106 = sphi 0, %s96
    %s114 = sphi 0, %s116
    %s117 = sphi 0, %s114
    %s127 = sphi 0, %s117
    %s133 = sphi 0, %s135
    %s136 = sphi 0, %s133
    %s146 = sphi 0, %s136
  $region4: #{moe_forward.1} parent=0 // loop_header_branch
    %27 = sbr.rel (%p25) target = $region8
  $region5: #{moe_forward.1} parent=0 // loop_body
    %s29 = ssub.s32 %s24, 1
    %s36 = sadd.s32 1, %s32
    %p37 = scmp.ge.s32.totalorder %s36, 1
    %s38 = scalar_select %p37, 0, %s36
    %s39 = sadd.s32 1, %s31
    %s40 = scalar_select %p37, %s39, %s31
    %p41 = scmp.ge.s32.totalorder %s40, 1
    %s42 = scalar_select %p41, 0, %s40
    %s43 = sadd.s32 1, %s30
    %s44 = scalar_select %p41, %s43, %s30
    %p45 = scmp.ge.s32.totalorder %s44, 4
    %s46 = scalar_select %p45, 0, %s44
    %s47 = ssub.s32 %s30, %s46
    %s48 = ssub.s32 %s31, %s42
    %s49 = sor.u32 %s47, %s48
    %p50 = scmp.eq.s32.totalorder %s49, 0
    %s52 = sadd.s32 %s51, 1
    %s53 = scalar_select %p50, %s51, %s52
    %p55 = pneg %p50
    %p56 = scmp.eq.s32.totalorder %s24, 3
    %p57 = por %p55, %p56
    %p58 = scmp.ne.s32.totalorder %s51, %s54
    %p59 = scmp.eq.s32.totalorder %s24, 0
    %p60 = por %p58, %p59
    %p61 = scmp.ne.s32.totalorder %s51, %s54
    %p62 = scmp.eq.s32.totalorder %s29, 3
    %p63 = por %p61, %p62
    %p65 = scmp.ne.s32.totalorder %s54, %s64
    %p66 = scmp.eq.s32.totalorder %s29, 0
    %p67 = por %p65, %p66
    %s68 = ssub.s32 %s30, %s46
    %s69 = ssub.s32 %s32, %s38
    %s70 = sor.u32 %s68, %s69
    %p71 = scmp.eq.s32.totalorder %s70, 0
    %s73 = sadd.s32 %s72, 1
    %s74 = scalar_select %p71, %s72, %s73
    %p76 = pneg %p71
    %p77 = scmp.eq.s32.totalorder %s24, 3
    %p78 = por %p76, %p77
    %p79 = scmp.ne.s32.totalorder %s72, %s75
    %p80 = scmp.eq.s32.totalorder %s24, 0
    %p81 = por %p79, %p80
    %p82 = scmp.ne.s32.totalorder %s72, %s75
    %p83 = scmp.eq.s32.totalorder %s29, 3
    %p84 = por %p82, %p83
    %p86 = scmp.ne.s32.totalorder %s75, %s85
    %p87 = scmp.eq.s32.totalorder %s29, 0
    %p88 = por %p86, %p87
    %s89 = ssub.s32 %s30, %s46
    %s90 = ssub.s32 %s32, %s38
    %s91 = sor.u32 %s89, %s90
    %p92 = scmp.eq.s32.totalorder %s91, 0
    %s94 = sadd.s32 %s93, 1
    %s95 = scalar_select %p92, %s93, %s94
    %p97 = pneg %p92
    %p98 = scmp.eq.s32.totalorder %s24, 3
    %p99 = por %p97, %p98
    %p100 = scmp.ne.s32.totalorder %s93, %s96
    %p101 = scmp.eq.s32.totalorder %s24, 0
    %p102 = por %p100, %p101
    %p103 = scmp.ne.s32.totalorder %s93, %s96
    %p104 = scmp.eq.s32.totalorder %s29, 3
    %p105 = por %p103, %p104
    %p107 = scmp.ne.s32.totalorder %s96, %s106
    %p108 = scmp.eq.s32.totalorder %s29, 0
    %p109 = por %p107, %p108
    %s110 = ssub.s32 %s30, %s46
    %s111 = ssub.s32 %s32, %s38
    %s112 = sor.u32 %s110, %s111
    %p113 = scmp.eq.s32.totalorder %s112, 0
    %s115 = sadd.s32 %s114, 1
    %s116 = scalar_select %p113, %s114, %s115
    %p118 = pneg %p113
    %p119 = scmp.eq.s32.totalorder %s24, 3
    %p120 = por %p118, %p119
    %p121 = scmp.ne.s32.totalorder %s114, %s117
    %p122 = scmp.eq.s32.totalorder %s24, 0
    %p123 = por %p121, %p122
    %p124 = scmp.ne.s32.totalorder %s114, %s117
    %p125 = scmp.eq.s32.totalorder %s29, 3
    %p126 = por %p124, %p125
    %p128 = scmp.ne.s32.totalorder %s117, %s127
    %p129 = scmp.eq.s32.totalorder %s29, 0
    %p130 = por %p128, %p129
    %s131 = ssub.s32 %s30, %s46
    %p132 = scmp.eq.s32.totalorder %s131, 0
    %s134 = sadd.s32 %s133, 1
    %s135 = scalar_select %p132, %s133, %s134
    %p137 = pneg %p132
    %p138 = scmp.eq.s32.totalorder %s24, 3
    %p139 = por %p137, %p138
    %p140 = scmp.ne.s32.totalorder %s133, %s136
    %p141 = scmp.eq.s32.totalorder %s24, 0
    %p142 = por %p140, %p141
    %p143 = scmp.ne.s32.totalorder %s133, %s136
    %p144 = scmp.eq.s32.totalorder %s29, 3
    %p145 = por %p143, %p144
    %p147 = scmp.ne.s32.totalorder %s136, %s146
    %p148 = scmp.eq.s32.totalorder %s29, 0
    %p149 = por %p147, %p148
    %p150 = scmp.le.s32.totalorder 1, %s24
    // Predicated region
    $region9: #{moe_forward.1} parent=5 // pred_check
      %p151 = pneg %p150
    $region10: #{moe_forward.1} parent=5 // pred_check_branch
      %153 = sbr.rel (%p151) target = $region12
    $region11: #{moe_forward.1} parent=5 // pred_region
      %s154 = ssub.s32 %s24, 1
    $region12: #{moe_forward.1} parent=5 // pred_fallthru
      _
    %p155 = scmp.lt.s32.totalorder %s24, 4
    // Predicated region
    $region13: #{moe_forward.1} parent=5 // pred_check
      %p156 = pneg %p155
    $region14: #{moe_forward.1} parent=5 // pred_check_branch
      %158 = sbr.rel (%p156) target = $region16
    $region15: #{moe_forward.1} parent=5 // pred_region
      // Predicated region
      $region17: #{moe_forward.1} parent=15 // pred_check
        %p159 = pneg %p60
      $region18: #{moe_forward.1} parent=15 // pred_check_branch
        %161 = sbr.rel (%p159) target = $region20
      $region19: #{moe_forward.1} parent=15 // pred_region
        %p162 = scmp.lt.s32.totalorder %s30, 3
        %s163 = scalar_select %p162, %s30, 3
        %p164 = scmp.lt.s32.totalorder %s31, 0
        %s165 = scalar_select %p164, %s31, 0
        %s166 = sadd.s32 %s165, %s163
        %s167 = smul.addr %s166, 4
        %s168 = scalar_lea.vmem %s3, %s167
      $region20: #{moe_forward.1} parent=15 // pred_fallthru
        _
      // Predicated region
      $region21: #{moe_forward.1} parent=15 // pred_check
        %p169 = pneg %p81
      $region22: #{moe_forward.1} parent=15 // pred_check_branch
        %171 = sbr.rel (%p169) target = $region24
      $region23: #{moe_forward.1} parent=15 // pred_region
        %p172 = scmp.lt.s32.totalorder %s30, 3
        %s173 = scalar_select %p172, %s30, 3
        %p174 = scmp.lt.s32.totalorder %s32, 0
        %s175 = scalar_select %p174, %s32, 0
        %s176 = smul.addr %s173, 4
        %s177 = sadd.s32 %s175, %s176
        %s178 = smul.addr %s177, 4
        %s179 = scalar_lea.vmem %s4, %s178
      $region24: #{moe_forward.1} parent=15 // pred_fallthru
        _
      // Predicated region
      $region25: #{moe_forward.1} parent=15 // pred_check
        %p180 = pneg %p102
      $region26: #{moe_forward.1} parent=15 // pred_check_branch
        %182 = sbr.rel (%p180) target = $region28
      $region27: #{moe_forward.1} parent=15 // pred_region
        %p183 = scmp.lt.s32.totalorder %s30, 3
        %s184 = scalar_select %p183, %s30, 3
        %p185 = scmp.lt.s32.totalorder %s32, 0
        %s186 = scalar_select %p185, %s32, 0
        %s187 = sadd.s32 %s186, %s184
        %s188 = scalar_lea.vmem %s5, %s187
      $region28: #{moe_forward.1} parent=15 // pred_fallthru
        _
      // Predicated region
      $region29: #{moe_forward.1} parent=15 // pred_check
        %p189 = pneg %p123
      $region30: #{moe_forward.1} parent=15 // pred_check_branch
        %191 = sbr.rel (%p189) target = $region32
      $region31: #{moe_forward.1} parent=15 // pred_region
        %s192 = smul.u32 8, %s32
        %p193 = scmp.lt.s32.totalorder %s30, 3
        %s194 = scalar_select %p193, %s30, 3
        %p195 = scmp.lt.s32.totalorder %s192, 7
        %s196 = scalar_select %p195, %s192, 7
        %s197 = smul.addr %s194, 8
        %s198 = sadd.s32 %s196, %s197
        %s199 = smul.addr %s198, 4
        %s200 = scalar_lea.vmem %s6, %s199
        %s201 = smul.u32 8, %s32
      $region32: #{moe_forward.1} parent=15 // pred_fallthru
        _
      // Predicated region
      $region33: #{moe_forward.1} parent=15 // pred_check
        %p202 = pneg %p142
      $region34: #{moe_forward.1} parent=15 // pred_check_branch
        %204 = sbr.rel (%p202) target = $region36
      $region35: #{moe_forward.1} parent=15 // pred_region
        %p205 = scmp.lt.s32.totalorder %s30, 3
        %s206 = scalar_select %p205, %s30, 3
        %s207 = scalar_lea.vmem %s7, %s206
      $region36: #{moe_forward.1} parent=15 // pred_fallthru
        _
    $region16: #{moe_forward.1} parent=5 // pred_fallthru
      _
    %p208 = scmp.le.s32.totalorder 1, %s24
    // Predicated region
    $region37: #{moe_forward.1} parent=5 // pred_check
      %p209 = pneg %p208
    $region38: #{moe_forward.1} parent=5 // pred_check_branch
      %211 = sbr.rel (%p209) target = $region40
    $region39: #{moe_forward.1} parent=5 // pred_region
      %s212 = ssub.s32 %s24, 1
      %p213 = scmp.lt.s32.totalorder %s33, 3
      %s214 = scalar_select %p213, %s33, 3
      %p215 = scmp.lt.s32.totalorder %s34, 0
      %s216 = scalar_select %p215, %s34, 0
      %s217 = sadd.s32 %s216, %s214
      %s218 = smul.addr %s217, 4
      %s219 = scalar_lea.vmem %s3, %s218
      %p220 = pneg %p67
      %p221 = pneg %p63
      %p222 = scmp.lt.s32.totalorder %s33, 3
      %s223 = scalar_select %p222, %s33, 3
      %p224 = scmp.lt.s32.totalorder %s35, 0
      %s225 = scalar_select %p224, %s35, 0
      %s226 = smul.addr %s223, 4
      %s227 = sadd.s32 %s225, %s226
      %s228 = smul.addr %s227, 4
      %s229 = scalar_lea.vmem %s4, %s228
      %p230 = pneg %p88
      %p231 = pneg %p84
      %p232 = scmp.lt.s32.totalorder %s33, 3
      %s233 = scalar_select %p232, %s33, 3
      %p234 = scmp.lt.s32.totalorder %s35, 0
      %s235 = scalar_select %p234, %s35, 0
      %s236 = sadd.s32 %s235, %s233
      %s237 = scalar_lea.vmem %s5, %s236
      %p238 = pneg %p109
      %p239 = pneg %p105
      %s240 = smul.u32 8, %s35
      %p241 = scmp.lt.s32.totalorder %s33, 3
      %s242 = scalar_select %p241, %s33, 3
      %p243 = scmp.lt.s32.totalorder %s240, 7
      %s244 = scalar_select %p243, %s240, 7
      %s245 = smul.addr %s242, 8
      %s246 = sadd.s32 %s244, %s245
      %s247 = smul.addr %s246, 4
      %s248 = scalar_lea.vmem %s6, %s247
      %p249 = pneg %p130
      %p250 = pneg %p126
      %p251 = scmp.lt.s32.totalorder %s33, 3
      %s252 = scalar_select %p251, %s33, 3
      %s253 = scalar_lea.vmem %s7, %s252
      %p254 = pneg %p149
      %p255 = pneg %p145
      %p256 = scmp.lt.s32.totalorder %s33, 3
      %s257 = scalar_select %p256, %s33, 3
      %p258 = scmp.lt.s32.totalorder %s34, 0
      %s259 = scalar_select %p258, %s34, 0
      %s260 = sadd.s32 %s259, %s257
      %s261 = smul.addr %s260, 4
      %s262 = scalar_lea.vmem %s3, %s261
      %p263 = scmp.lt.s32.totalorder %s33, 3
      %s264 = scalar_select %p263, %s33, 3
      %p265 = scmp.lt.s32.totalorder %s35, 0
      %s266 = scalar_select %p265, %s35, 0
      %s267 = smul.addr %s264, 4
      %s268 = sadd.s32 %s266, %s267
      %s269 = smul.addr %s268, 4
      %s270 = scalar_lea.vmem %s4, %s269
      %p271 = scmp.lt.s32.totalorder %s33, 3
      %s272 = scalar_select %p271, %s33, 3
      %p273 = scmp.lt.s32.totalorder %s35, 0
      %s274 = scalar_select %p273, %s35, 0
      %s275 = sadd.s32 %s274, %s272
      %s276 = scalar_lea.vmem %s5, %s275
      %s277 = smul.u32 8, %s35
      %p278 = scmp.lt.s32.totalorder %s33, 3
      %s279 = scalar_select %p278, %s33, 3
      %p280 = scmp.lt.s32.totalorder %s277, 7
      %s281 = scalar_select %p280, %s277, 7
      %s282 = smul.addr %s279, 8
      %s283 = sadd.s32 %s281, %s282
      %s284 = smul.addr %s283, 4
      %s285 = scalar_lea.vmem %s6, %s284
      %s286 = smul.u32 8, %s35
      %p287 = scmp.lt.s32.totalorder %s33, 3
      %s288 = scalar_select %p287, %s33, 3
      %s289 = scalar_lea.vmem %s7, %s288
      %p291 = scmp.eq.s32.totalorder %s35, 0
      // Predicated region
      $region41: #{moe_forward.1} parent=39 // pred_check
        %p292 = pneg %p291
      $region42: #{moe_forward.1} parent=39 // pred_check_branch
        %294 = sbr.rel (%p292) target = $region44
      $region43: #{moe_forward.1} parent=39 // pred_region
        %p295 = scmp.eq.s32.totalorder %s34, 0
        // Predicated region
        $region45: #{moe_forward.1} parent=43 // pred_check
          %p296 = pneg %p295
        $region46: #{moe_forward.1} parent=43 // pred_check_branch
          %298 = sbr.rel (%p296) target = $region48
        $region47: #{moe_forward.1} parent=43 // pred_region
          %s299 = smul.u32 %s33, 4
          %s300 = smul.u32 %s34, 4
          %s301 = sadd.s32 %s299, %s300
          loop: start=0, step=1, limit=4
          $region49: #{moe_forward.1} parent=47 // loop_pre_header
            _
          $region50: #{moe_forward.1} parent=47 // loop_header
            %s303 = sphi 0, %s307
            %p304 = scmp.ge.s32.totalorder %s303, 4
          $region51: #{moe_forward.1} parent=47 // loop_header_branch
            %306 = sbr.rel (%p304) target = $region55
          $region52: #{moe_forward.1} parent=47 // loop_body
            %s308 = sadd.s32 %s301, %s303
            %s309 = sld [smem:[#allocation8 + %s308]]
            %s310 = scalar_lea.vmem %s2, %s309
            %s311 = scalar_lea.vmem [#allocation2], %s303
            %p313 = scmp.lt.u32.totalorder 1, 8
            %p314 = pneg %p313
            // Predicated region
            $region56: #{moe_forward.1} parent=52 // pred_check
              _
            $region57: #{moe_forward.1} parent=52 // pred_check_branch
              %316 = sbr.rel (%p313) target = $region59
            $region58: #{moe_forward.1} parent=52 // pred_region
              %s331 = sand.u32 1, 7
              %p332 = scmp.eq.s32.totalorder %s331, 0
              %p333 = pneg %p332
              // Predicated region
              $region71: #{moe_forward.1} parent=58 // pred_check
                _
              $region72: #{moe_forward.1} parent=58 // pred_check_branch
                %335 = sbr.rel (%p332) target = $region74
              $region73: #{moe_forward.1} parent=58 // pred_region
                %s336 = sand.u32 1, 7
                %s337 = ssub.s32 1, %s336
                %s338 = scalar_lea.vmem %s310, %s337
                %s339 = ssub.s32 1, %s336
                %s340 = scalar_lea.vmem %s311, %s339 [#allocation2]
                %s341 = sshllo.u32 0, %s336
                loop: start=0, step=1, limit=1
                $region75: #{moe_forward.1} parent=73 // loop_pre_header
                  _
                $region76: #{moe_forward.1} parent=73 // loop_header
                  %s343 = sphi 0, %s347
                  %p344 = scmp.ge.s32.totalorder %s343, 1
                  %s348 = sphi %s338, %s338
                  %s349 = sphi %s340, %s340
                $region77: #{moe_forward.1} parent=73 // loop_header_branch
                  %346 = sbr.rel (%p344) target = $region81
                $region78: #{moe_forward.1} parent=73 // loop_body
                  %v350 = vld [vmem:[%s348] sm:%s341]
                  %351 = vst [vmem:[%s349] sm:%s341] %v350
                $region79: #{moe_forward.1} parent=73 // loop_footer
                  %s347 = sadd.s32 1, %s343
                $region80: #{moe_forward.1} parent=73 // loop_footer_branch
                  %342 = sbr.rel target = $region76
                $region81: #{moe_forward.1} parent=73 // loop_exit
                  _
              $region74: #{moe_forward.1} parent=58 // pred_fallthru
                _
            $region59: #{moe_forward.1} parent=52 // pred_fallthru
              _
            // Predicated region
            $region60: #{moe_forward.1} parent=52 // pred_check
              %p317 = pneg %p313
            $region61: #{moe_forward.1} parent=52 // pred_check_branch
              %319 = sbr.rel (%p317) target = $region63
            $region62: #{moe_forward.1} parent=52 // pred_region
              %s320 = sshllo.u32 0, 1
              loop: start=0, step=1, limit=1
              $region64: #{moe_forward.1} parent=62 // loop_pre_header
                _
              $region65: #{moe_forward.1} parent=62 // loop_header
                %s322 = sphi 0, %s326
                %p323 = scmp.ge.s32.totalorder %s322, 1
                %s327 = sphi %s310, %s310
                %s328 = sphi %s311, %s311
              $region66: #{moe_forward.1} parent=62 // loop_header_branch
                %325 = sbr.rel (%p323) target = $region70
              $region67: #{moe_forward.1} parent=62 // loop_body
                %v329 = vld [vmem:[%s327] sm:%s320]
                %330 = vst [vmem:[%s328] sm:%s320] %v329
              $region68: #{moe_forward.1} parent=62 // loop_footer
                %s326 = sadd.s32 1, %s322
              $region69: #{moe_forward.1} parent=62 // loop_footer_branch
                %321 = sbr.rel target = $region65
              $region70: #{moe_forward.1} parent=62 // loop_exit
                _
            $region63: #{moe_forward.1} parent=52 // pred_fallthru
              _
            // Predicated region
            $region82: #{moe_forward.1} parent=52 // pred_check
              _
            $region83: #{moe_forward.1} parent=52 // pred_check_branch
              %354 = sbr.rel (0) target = $region85
            $region84: #{moe_forward.1} parent=52 // pred_region
              %355 = vsyncadd [#allocation5], 16
            $region85: #{moe_forward.1} parent=52 // pred_fallthru
              _
          $region53: #{moe_forward.1} parent=47 // loop_footer
            %s307 = sadd.s32 1, %s303
          $region54: #{moe_forward.1} parent=47 // loop_footer_branch
            %302 = sbr.rel target = $region50
          $region55: #{moe_forward.1} parent=47 // loop_exit
            _
        $region48: #{moe_forward.1} parent=43 // pred_fallthru
          _
        loop: start=0, step=1, limit=4
        $region86: #{moe_forward.1} parent=43 // loop_pre_header
          _
        $region87: #{moe_forward.1} parent=43 // loop_header
          %s357 = sphi 0, %s361
          %p358 = scmp.ge.s32.totalorder %s357, 4
        $region88: #{moe_forward.1} parent=43 // loop_header_branch
          %360 = sbr.rel (%p358) target = $region92
        $region89: #{moe_forward.1} parent=43 // loop_body
          %s362 = smul.u32 1, 1
          %s363 = sshll.u32 %s362, 4
          %364 = dma.done [#allocation5], %s363
        $region90: #{moe_forward.1} parent=43 // loop_footer
          %s361 = sadd.s32 1, %s357
        $region91: #{moe_forward.1} parent=43 // loop_footer_branch
          %356 = sbr.rel target = $region87
        $region92: #{moe_forward.1} parent=43 // loop_exit
          _
        %v365 = vld [vmem:[#allocation2] sm:$0xf]
        %v366 = vpack.c.bf16 %v365, %v365
        %vm367 = vcmask 254976
        %368 = vst.msk [vmem:[#allocation3] sm:$0x3] %vm367, %v366
        %v369 = vld [vmem:[%s289] sm:$0x1]
        %v371 = vlaneseq
        %v372 = vshrl.u32 %v371, 7
        %v373 = vsub.s32 0, %v372
        %v374 = vrot.slane %v369, %v373
        %vm376 = vcmask 257024
        %377 = vst.msk [vmem:[#allocation4] sm:$0xf] %vm376, %v374
        %s378 = sadd.s32 %s34, 1
        %p379 = scmp.lt.s32.totalorder %s378, 1
        // Predicated region
        $region93: #{moe_forward.1} parent=43 // pred_check
          %p380 = pneg %p379
        $region94: #{moe_forward.1} parent=43 // pred_check_branch
          %382 = sbr.rel (%p380) target = $region96
        $region95: #{moe_forward.1} parent=43 // pred_region
          %s383 = smul.u32 %s33, 4
          %s384 = smul.u32 %s378, 4
          %s385 = sadd.s32 %s383, %s384
          loop: start=0, step=1, limit=4
          $region97: #{moe_forward.1} parent=95 // loop_pre_header
            _
          $region98: #{moe_forward.1} parent=95 // loop_header
            %s387 = sphi 0, %s391
            %p388 = scmp.ge.s32.totalorder %s387, 4
          $region99: #{moe_forward.1} parent=95 // loop_header_branch
            %390 = sbr.rel (%p388) target = $region103
          $region100: #{moe_forward.1} parent=95 // loop_body
            %s392 = sadd.s32 %s385, %s387
            %s393 = sld [smem:[#allocation8 + %s392]]
            %s394 = scalar_lea.vmem %s2, %s393
            %s395 = scalar_lea.vmem [#allocation2], %s387
            %p397 = scmp.lt.u32.totalorder 1, 8
            %p398 = pneg %p397
            // Predicated region
            $region104: #{moe_forward.1} parent=100 // pred_check
              _
            $region105: #{moe_forward.1} parent=100 // pred_check_branch
              %400 = sbr.rel (%p397) target = $region107
            $region106: #{moe_forward.1} parent=100 // pred_region
              %s415 = sand.u32 1, 7
              %p416 = scmp.eq.s32.totalorder %s415, 0
              %p417 = pneg %p416
              // Predicated region
              $region119: #{moe_forward.1} parent=106 // pred_check
                _
              $region120: #{moe_forward.1} parent=106 // pred_check_branch
                %419 = sbr.rel (%p416) target = $region122
              $region121: #{moe_forward.1} parent=106 // pred_region
                %s420 = sand.u32 1, 7
                %s421 = ssub.s32 1, %s420
                %s422 = scalar_lea.vmem %s394, %s421
                %s423 = ssub.s32 1, %s420
                %s424 = scalar_lea.vmem %s395, %s423 [#allocation2]
                %s425 = sshllo.u32 0, %s420
                loop: start=0, step=1, limit=1
                $region123: #{moe_forward.1} parent=121 // loop_pre_header
                  _
                $region124: #{moe_forward.1} parent=121 // loop_header
                  %s427 = sphi 0, %s431
                  %p428 = scmp.ge.s32.totalorder %s427, 1
                  %s432 = sphi %s422, %s422
                  %s433 = sphi %s424, %s424
                $region125: #{moe_forward.1} parent=121 // loop_header_branch
                  %430 = sbr.rel (%p428) target = $region129
                $region126: #{moe_forward.1} parent=121 // loop_body
                  %v434 = vld [vmem:[%s432] sm:%s425]
                  %435 = vst [vmem:[%s433] sm:%s425] %v434
                $region127: #{moe_forward.1} parent=121 // loop_footer
                  %s431 = sadd.s32 1, %s427
                $region128: #{moe_forward.1} parent=121 // loop_footer_branch
                  %426 = sbr.rel target = $region124
                $region129: #{moe_forward.1} parent=121 // loop_exit
                  _
              $region122: #{moe_forward.1} parent=106 // pred_fallthru
                _
            $region107: #{moe_forward.1} parent=100 // pred_fallthru
              _
            // Predicated region
            $region108: #{moe_forward.1} parent=100 // pred_check
              %p401 = pneg %p397
            $region109: #{moe_forward.1} parent=100 // pred_check_branch
              %403 = sbr.rel (%p401) target = $region111
            $region110: #{moe_forward.1} parent=100 // pred_region
              %s404 = sshllo.u32 0, 1
              loop: start=0, step=1, limit=1
              $region112: #{moe_forward.1} parent=110 // loop_pre_header
                _
              $region113: #{moe_forward.1} parent=110 // loop_header
                %s406 = sphi 0, %s410
                %p407 = scmp.ge.s32.totalorder %s406, 1
                %s411 = sphi %s394, %s394
                %s412 = sphi %s395, %s395
              $region114: #{moe_forward.1} parent=110 // loop_header_branch
                %409 = sbr.rel (%p407) target = $region118
              $region115: #{moe_forward.1} parent=110 // loop_body
                %v413 = vld [vmem:[%s411] sm:%s404]
                %414 = vst [vmem:[%s412] sm:%s404] %v413
              $region116: #{moe_forward.1} parent=110 // loop_footer
                %s410 = sadd.s32 1, %s406
              $region117: #{moe_forward.1} parent=110 // loop_footer_branch
                %405 = sbr.rel target = $region113
              $region118: #{moe_forward.1} parent=110 // loop_exit
                _
            $region111: #{moe_forward.1} parent=100 // pred_fallthru
              _
            // Predicated region
            $region130: #{moe_forward.1} parent=100 // pred_check
              _
            $region131: #{moe_forward.1} parent=100 // pred_check_branch
              %438 = sbr.rel (0) target = $region133
            $region132: #{moe_forward.1} parent=100 // pred_region
              %439 = vsyncadd [#allocation5], 16
            $region133: #{moe_forward.1} parent=100 // pred_fallthru
              _
          $region101: #{moe_forward.1} parent=95 // loop_footer
            %s391 = sadd.s32 1, %s387
          $region102: #{moe_forward.1} parent=95 // loop_footer_branch
            %386 = sbr.rel target = $region98
          $region103: #{moe_forward.1} parent=95 // loop_exit
            _
        $region96: #{moe_forward.1} parent=43 // pred_fallthru
          _
      $region44: #{moe_forward.1} parent=39 // pred_fallthru
        _
      %v440 = vld [vmem:[#allocation3] sm:$0x3]
      %v441 = vld [vmem:[%s270] sm:$0xf]
      %v442 = vld [vmem:[%s270 + $0x4] sm:$0xf]
      %v443 = vld [vmem:[%s270 + $0x8] sm:$0xf]
      %v444 = vld [vmem:[%s270 + $0xc] sm:$0xf]
      %v445 = vld [vmem:[%s276] sm:$0x1]
      %v447 = vlaneseq
      %v448 = vshrl.u32 %v447, 7
      %v449 = vsub.s32 0, %v448
      %v450 = vrot.slane %v445, %v449
      %v456 = vunpack.c.l.b16 %v441
      %v457 = vunpack.c.l.b16 %v442
      %v458 = vunpack.c.l.b16 %v443
      %v459 = vunpack.c.l.b16 %v444
      %v460 = vpack.c.b16 %v457, %v456
      %v461 = vpack.c.b16 %v459, %v458
      %vm464 = vcmask 261120
      %v466 = vsel %vm464, %v440, 0
      %468 = vmatprep.subr.bf16.mxu0 0
      %469 = vmatpush1.bf16.msra.mxu0 %v460
      %470 = vmatprep.subr.bf16.mxu0 0
      %471 = vmatpush1.bf16.msra.mxu0 %v461
      %472 = vmatprep.subr.bf16.mxu0 0
      %473 = vmatpush1.bf16.msra.mxu0 0
      %474 = vmatprep.subr.bf16.mxu0 0
      %475 = vmatpush1.bf16.msra.mxu0 0
      %476 = vmatprep.subr.bf16.mxu0 0
      %477 = vmatpush1.bf16.msra.mxu0 0
      %478 = vmatprep.subr.bf16.mxu0 0
      %479 = vmatpush1.bf16.msra.mxu0 0
      %480 = vmatprep.subr.bf16.mxu0 0
      %481 = vmatpush1.bf16.msra.mxu0 0
      %482 = vmatprep.subr.bf16.mxu0 0
      %483 = vmatpush1.bf16.msra.mxu0 0
      %484 = vmatprep.subr.bf16.mxu0 0
      %485 = vmatpush1.bf16.msra.mxu0 0
      %486 = vmatprep.subr.bf16.mxu0 0
      %487 = vmatpush1.bf16.msra.mxu0 0
      %488 = vmatprep.subr.bf16.mxu0 0
      %489 = vmatpush1.bf16.msra.mxu0 0
      %490 = vmatprep.subr.bf16.mxu0 0
      %491 = vmatpush1.bf16.msra.mxu0 0
      %492 = vmatprep.subr.bf16.mxu0 0
      %493 = vmatpush1.bf16.msra.mxu0 0
      %494 = vmatprep.subr.bf16.mxu0 0
      %495 = vmatpush1.bf16.msra.mxu0 0
      %496 = vmatprep.subr.bf16.mxu0 0
      %497 = vmatpush1.bf16.msra.mxu0 0
      %498 = vmatprep.subr.bf16.mxu0 0
      %499 = vmatpush1.bf16.msra.mxu0 0
      %500 = vmatprep.mubr.bf16.mxu0 0
      %501 = vmatmul.mubr.bf16.gmra.mrb[0].mxu0 %v466
      %v502 = vpop.f32.mrb[0].mxu0
      %v503 = vadd.f32 %v450, %v502
      %v504 = vpop.f32.mrb[0].mxu0
      %v505 = vpop.f32.mrb[0].mxu0
      %v506 = vpop.f32.mrb[0].mxu0
      %507 = vdwg.mxu0
      %v508 = vmul.f32 %v503, %v503
      %v509 = vmul.f32 %v503, %v508
      %v510 = vmul.f32 %v509, 0.044715
      %v511 = vadd.f32 %v503, %v510
      %v512 = vmul.f32 %v511, 0.7978846
      %v513 = vtanh.pop %v512
      %v514 = vadd.f32 %v513, 1.0
      %v515 = vmul.f32 %v514, 0.5
      %v516 = vmul.f32 %v503, %v515
      %v517 = vld [vmem:[#allocation4] sm:$0xf]
      %v518 = vpack.c.bf16 %v516, %v516
      %v519 = vld [vmem:[%s285] sm:$0xf]
      %v520 = vld [vmem:[%s285 + $0x4] sm:$0xf]
      %v521 = vld [vmem:[%s285 + $0x8] sm:$0xf]
      %v522 = vld [vmem:[%s285 + $0xc] sm:$0xf]
      %v523 = vld [vmem:[%s285 + $0x10] sm:$0xf]
      %v524 = vld [vmem:[%s285 + $0x14] sm:$0xf]
      %v525 = vld [vmem:[%s285 + $0x18] sm:$0xf]
      %v526 = vld [vmem:[%s285 + $0x1c] sm:$0xf]
      %v535 = vunpack.c.l.b16 %v519
      %v536 = vunpack.c.l.b16 %v520
      %v537 = vunpack.c.l.b16 %v521
      %v538 = vunpack.c.l.b16 %v522
      %v539 = vunpack.c.l.b16 %v523
      %v540 = vunpack.c.l.b16 %v524
      %v541 = vunpack.c.l.b16 %v525
      %v542 = vunpack.c.l.b16 %v526
      %v543 = vpack.c.b16 %v536, %v535
      %v544 = vpack.c.b16 %v538, %v537
      %v545 = vpack.c.b16 %v540, %v539
      %v546 = vpack.c.b16 %v542, %v541
      %vm551 = vcmask 523264
      %v553 = vsel %vm551, %v518, 0
      %555 = vmatprep.subr.bf16.mxu0 0
      %556 = vmatpush1.bf16.msra.mxu0 %v543
      %557 = vmatprep.subr.bf16.mxu0 0
      %558 = vmatpush1.bf16.msra.mxu0 %v544
      %559 = vmatprep.subr.bf16.mxu0 0
      %560 = vmatpush1.bf16.msra.mxu0 %v545
      %561 = vmatprep.subr.bf16.mxu0 0
      %562 = vmatpush1.bf16.msra.mxu0 %v546
      %563 = vmatprep.subr.bf16.mxu0 0
      %564 = vmatpush1.bf16.msra.mxu0 0
      %565 = vmatprep.subr.bf16.mxu0 0
      %566 = vmatpush1.bf16.msra.mxu0 0
      %567 = vmatprep.subr.bf16.mxu0 0
      %568 = vmatpush1.bf16.msra.mxu0 0
      %569 = vmatprep.subr.bf16.mxu0 0
      %570 = vmatpush1.bf16.msra.mxu0 0
      %571 = vmatprep.subr.bf16.mxu0 0
      %572 = vmatpush1.bf16.msra.mxu0 0
      %573 = vmatprep.subr.bf16.mxu0 0
      %574 = vmatpush1.bf16.msra.mxu0 0
      %575 = vmatprep.subr.bf16.mxu0 0
      %576 = vmatpush1.bf16.msra.mxu0 0
      %577 = vmatprep.subr.bf16.mxu0 0
      %578 = vmatpush1.bf16.msra.mxu0 0
      %579 = vmatprep.subr.bf16.mxu0 0
      %580 = vmatpush1.bf16.msra.mxu0 0
      %581 = vmatprep.subr.bf16.mxu0 0
      %582 = vmatpush1.bf16.msra.mxu0 0
      %583 = vmatprep.subr.bf16.mxu0 0
      %584 = vmatpush1.bf16.msra.mxu0 0
      %585 = vmatprep.subr.bf16.mxu0 0
      %586 = vmatpush1.bf16.msra.mxu0 0
      %587 = vmatprep.mubr.bf16.mxu0 0
      %588 = vmatmul.mubr.bf16.gmra.mrb[0].mxu0 %v553
      %v589 = vpop.f32.mrb[0].mxu0
      %v590 = vadd.f32 0.0, %v589
      %v591 = vpop.f32.mrb[0].mxu0
      %v592 = vpop.f32.mrb[0].mxu0
      %v593 = vpop.f32.mrb[0].mxu0
      %594 = vdwg.mxu0
      %v595 = vadd.f32 %v517, %v590
      %vm596 = vcmask 257024
      %597 = vst.msk [vmem:[#allocation4] sm:$0xf] %vm596, %v595
      // Predicated region
      $region134: #{moe_forward.1} parent=39 // pred_check
        %p598 = pneg %p291
      $region135: #{moe_forward.1} parent=39 // pred_check_branch
        %600 = sbr.rel (%p598) target = $region137
      $region136: #{moe_forward.1} parent=39 // pred_region
        %v601 = vld [vmem:[#allocation4] sm:$0xf]
        %v602 = vld [vmem:[%s262] sm:$0xf]
        %604 = vset.pattern.permute.xlu0 0
        %605 = vperm.xlu0 %604, %v602
        %v606 = vpop.permute.xlu0 %605
        %v608 = vmul.f32 %v601, %v606
        %609 = vst.msk [vmem:[#allocation4] sm:$0xf] %vm596, %v608
        %s610 = smul.u32 %s33, 4
        %s611 = smul.u32 %s34, 4
        %s612 = sadd.s32 %s610, %s611
        loop: start=0, step=1, limit=4
        $region138: #{moe_forward.1} parent=136 // loop_pre_header
          _
        $region139: #{moe_forward.1} parent=136 // loop_header
          %s614 = sphi 0, %s618
          %p615 = scmp.ge.s32.totalorder %s614, 4
        $region140: #{moe_forward.1} parent=136 // loop_header_branch
          %617 = sbr.rel (%p615) target = $region144
        $region141: #{moe_forward.1} parent=136 // loop_body
          %s619 = sadd.s32 %s612, %s614
          %s620 = sld [smem:[#allocation9 + %s619]]
          %s621 = scalar_lea.vmem [#allocation4], %s614
          %s622 = scalar_lea.vmem %s8, %s620
          %p624 = scmp.lt.u32.totalorder 1, 8
          %p625 = pneg %p624
          // Predicated region
          $region145: #{moe_forward.1} parent=141 // pred_check
            _
          $region146: #{moe_forward.1} parent=141 // pred_check_branch
            %627 = sbr.rel (%p624) target = $region148
          $region147: #{moe_forward.1} parent=141 // pred_region
            %s642 = sand.u32 1, 7
            %p643 = scmp.eq.s32.totalorder %s642, 0
            %p644 = pneg %p643
            // Predicated region
            $region160: #{moe_forward.1} parent=147 // pred_check
              _
            $region161: #{moe_forward.1} parent=147 // pred_check_branch
              %646 = sbr.rel (%p643) target = $region163
            $region162: #{moe_forward.1} parent=147 // pred_region
              %s647 = sand.u32 1, 7
              %s648 = ssub.s32 1, %s647
              %s649 = scalar_lea.vmem %s621, %s648 [#allocation4]
              %s650 = ssub.s32 1, %s647
              %s651 = scalar_lea.vmem %s622, %s650
              %s652 = sshllo.u32 0, %s647
              loop: start=0, step=1, limit=1
              $region164: #{moe_forward.1} parent=162 // loop_pre_header
                _
              $region165: #{moe_forward.1} parent=162 // loop_header
                %s654 = sphi 0, %s658
                %p655 = scmp.ge.s32.totalorder %s654, 1
                %s659 = sphi %s649, %s649
                %s660 = sphi %s651, %s651
              $region166: #{moe_forward.1} parent=162 // loop_header_branch
                %657 = sbr.rel (%p655) target = $region170
              $region167: #{moe_forward.1} parent=162 // loop_body
                %v661 = vld [vmem:[%s659] sm:%s652]
                %662 = vst [vmem:[%s660] sm:%s652] %v661
              $region168: #{moe_forward.1} parent=162 // loop_footer
                %s658 = sadd.s32 1, %s654
              $region169: #{moe_forward.1} parent=162 // loop_footer_branch
                %653 = sbr.rel target = $region165
              $region170: #{moe_forward.1} parent=162 // loop_exit
                _
            $region163: #{moe_forward.1} parent=147 // pred_fallthru
              _
          $region148: #{moe_forward.1} parent=141 // pred_fallthru
            _
          // Predicated region
          $region149: #{moe_forward.1} parent=141 // pred_check
            %p628 = pneg %p624
          $region150: #{moe_forward.1} parent=141 // pred_check_branch
            %630 = sbr.rel (%p628) target = $region152
          $region151: #{moe_forward.1} parent=141 // pred_region
            %s631 = sshllo.u32 0, 1
            loop: start=0, step=1, limit=1
            $region153: #{moe_forward.1} parent=151 // loop_pre_header
              _
            $region154: #{moe_forward.1} parent=151 // loop_header
              %s633 = sphi 0, %s637
              %p634 = scmp.ge.s32.totalorder %s633, 1
              %s638 = sphi %s621, %s621
              %s639 = sphi %s622, %s622
            $region155: #{moe_forward.1} parent=151 // loop_header_branch
              %636 = sbr.rel (%p634) target = $region159
            $region156: #{moe_forward.1} parent=151 // loop_body
              %v640 = vld [vmem:[%s638] sm:%s631]
              %641 = vst [vmem:[%s639] sm:%s631] %v640
            $region157: #{moe_forward.1} parent=151 // loop_footer
              %s637 = sadd.s32 1, %s633
            $region158: #{moe_forward.1} parent=151 // loop_footer_branch
              %632 = sbr.rel target = $region154
            $region159: #{moe_forward.1} parent=151 // loop_exit
              _
          $region152: #{moe_forward.1} parent=141 // pred_fallthru
            _
          // Predicated region
          $region171: #{moe_forward.1} parent=141 // pred_check
            _
          $region172: #{moe_forward.1} parent=141 // pred_check_branch
            %665 = sbr.rel (0) target = $region174
          $region173: #{moe_forward.1} parent=141 // pred_region
            %666 = vsyncadd [#allocation6], 16
          $region174: #{moe_forward.1} parent=141 // pred_fallthru
            _
        $region142: #{moe_forward.1} parent=136 // loop_footer
          %s618 = sadd.s32 1, %s614
        $region143: #{moe_forward.1} parent=136 // loop_footer_branch
          %613 = sbr.rel target = $region139
        $region144: #{moe_forward.1} parent=136 // loop_exit
          _
        loop: start=0, step=1, limit=4
        $region175: #{moe_forward.1} parent=136 // loop_pre_header
          _
        $region176: #{moe_forward.1} parent=136 // loop_header
          %s668 = sphi 0, %s672
          %p669 = scmp.ge.s32.totalorder %s668, 4
        $region177: #{moe_forward.1} parent=136 // loop_header_branch
          %671 = sbr.rel (%p669) target = $region181
        $region178: #{moe_forward.1} parent=136 // loop_body
          %s673 = smul.u32 1, 1
          %s674 = sshll.u32 %s673, 4
          %675 = dma.done [#allocation6], %s674
        $region179: #{moe_forward.1} parent=136 // loop_footer
          %s672 = sadd.s32 1, %s668
        $region180: #{moe_forward.1} parent=136 // loop_footer_branch
          %667 = sbr.rel target = $region176
        $region181: #{moe_forward.1} parent=136 // loop_exit
          _
      $region137: #{moe_forward.1} parent=39 // pred_fallthru
        _
    $region40: #{moe_forward.1} parent=5 // pred_fallthru
      _
  $region6: #{moe_forward.1} parent=0 // loop_footer
    %s28 = sadd.s32 1, %s24
  $region7: #{moe_forward.1} parent=0 // loop_footer_branch
    %23 = sbr.rel target = $region3
  $region8: #{moe_forward.1} parent=0 // loop_exit
    _
  %676 = vsyncmov [#allocation5]
  %s677 = vpop.sfrf %676
  %p678 = scmp.eq.s32.totalorder %s677, 0
  %p679 = pneg %p678
  %681 = shalt.err (%p679)
  %682 = vsyncmov [#allocation6]
  %s683 = vpop.sfrf %682
  %p684 = scmp.eq.s32.totalorder %s683, 0
  %p685 = pneg %p684
  %687 = shalt.err (%p685)

</llo_original>
